<compile_context>
chip_gen: v7x
topology: tpu7x:2x2x1
jax: 0.10.0
libtpu: 0.0.40
codegen_flags: <defaults>
</compile_context>

<pallas_src>
import functools

import jax
import jax.numpy as jnp
from jax.experimental import pallas as pl
from jax.experimental.pallas import tpu as pltpu

TM = 256   # output-row tile   (matches 256-wide MXU on v6e/v7x; fine on v5e)
TN = 256   # output-chan tile  (2nd parallel grid axis -> v7x dual-TC sharding)
TR = 512   # row tile for the elementwise maxpool kernel


@functools.lru_cache(maxsize=None)
def _vmem_limit_bytes():
    """Generation-aware scoped-VMEM limit (v7x has only 64 MiB physical/TC)."""
    fallback = 48 * 1024 * 1024                       # safe on v5e/v6e/v7x
    try:
        cap = int(pltpu.get_tpu_info().vmem_capacity_bytes)
    except Exception:
        return fallback
    return max(32 * 1024 * 1024, min(cap - 8 * 1024 * 1024, 112 * 1024 * 1024))


# --------------------------- Pallas kernels ---------------------------------

def _matmul_bias_kernel(a_ref, b_ref, bias_ref, o_ref, *, relu):
    """out = relu?( a @ b + bias ) ; BN scale is pre-folded into b."""
    y = jnp.dot(a_ref[...], b_ref[...], preferred_element_type=jnp.float32)
    y = y + bias_ref[...]                    # f32 epilogue (v5e has no bf16 VPU)
    if relu:
        y = jnp.maximum(y, 0.0)
    o_ref[...] = y.astype(o_ref.dtype)


def _matmul_bias_residual_kernel(a_ref, b_ref, bias_ref, id_ref, o_ref):
    """out = relu( a @ b + bias + identity ) — conv3 + residual add fused."""
    y = jnp.dot(a_ref[...], b_ref[...], preferred_element_type=jnp.float32)
    y = y + bias_ref[...] + id_ref[...]
    o_ref[...] = jnp.maximum(y, 0.0).astype(o_ref.dtype)


def matmul_fused(a, b, bias, *, relu, identity=None):
    """a: (M, K) bf16, b: (K, Cout) bf16, bias: (1, Cout) f32,
    identity: optional (M, Cout) f32 (fused residual add + ReLU)."""
    M, K = a.shape
    Cout = b.shape[1]
    bm = M if M < TM else TM
    bn = Cout if Cout < TN else TN
    grid = (pl.cdiv(M, bm), pl.cdiv(Cout, bn))
    in_specs = [
        pl.BlockSpec((bm, K), lambda i, j: (i, 0)),     # activation rows
        pl.BlockSpec((K, bn), lambda i, j: (0, j)),     # BN-folded weights
        pl.BlockSpec((1, bn), lambda i, j: (0, j)),     # BN bias
    ]
    args = [a, b, bias]
    if identity is None:
        kernel = functools.partial(_matmul_bias_kernel, relu=relu)
    else:
        kernel = _matmul_bias_residual_kernel
        in_specs.append(pl.BlockSpec((bm, bn), lambda i, j: (i, j)))
        args.append(identity)
    return pl.pallas_call(
        kernel,
        out_shape=jax.ShapeDtypeStruct((M, Cout), jnp.float32),
        grid=grid,
        in_specs=in_specs,
        out_specs=pl.BlockSpec((bm, bn), lambda i, j: (i, j)),
        compiler_params=pltpu.CompilerParams(
            dimension_semantics=("parallel", "parallel"),
            vmem_limit_bytes=_vmem_limit_bytes(),
        ),
    )(*args)


def _max9_kernel(x_ref, o_ref):
    m = x_ref[0]
    for i in range(1, 9):
        m = jnp.maximum(m, x_ref[i])
    o_ref[...] = m


def max9(stacked):
    """(9, M, C) -> (M, C), tiled over rows so big activations never need one
    giant VMEM block."""
    _, M, C = stacked.shape
    bm = M if M < TR else TR
    grid = (pl.cdiv(M, bm),)
    return pl.pallas_call(
        _max9_kernel,
        out_shape=jax.ShapeDtypeStruct((M, C), jnp.float32),
        grid=grid,
        in_specs=[pl.BlockSpec((9, bm, C), lambda i: (0, i, 0))],
        out_specs=pl.BlockSpec((bm, C), lambda i: (i, 0)),
        compiler_params=pltpu.CompilerParams(
            dimension_semantics=("parallel",),
            vmem_limit_bytes=_vmem_limit_bytes(),
        ),
    )(stacked)


# ------------------------------ Glue (plain JAX, fused under jit) ------------

def im2col(x, kh, kw, stride, pad):
    """x: NHWC -> (N*OH*OW, kh*kw*C) patch matrix (kh, kw, C ordering)."""
    # TODO(synk): fuse im2col into the matmul kernel via a tap grid axis +
    #             accumulator to avoid the kh*kw HBM patch-matrix amplification.
    N, H, W, C = x.shape
    xp = jnp.pad(x, ((0, 0), (pad, pad), (pad, pad), (0, 0)))
    OH = (H + 2 * pad - kh) // stride + 1
    OW = (W + 2 * pad - kw) // stride + 1
    cols = []
    for i in range(kh):
        for j in range(kw):
            cols.append(xp[:, i:i + stride * OH:stride,
                           j:j + stride * OW:stride, :])
    patches = jnp.stack(cols, axis=3)  # (N, OH, OW, kh*kw, C)
    return patches.reshape(N * OH * OW, kh * kw * C), OH, OW


def conv_bn(x, w, bias, *, stride, pad, relu, identity=None):
    """x: NHWC f32; w: (KH,KW,Cin,Cout) bf16 (BN scale folded); bias: (Cout,) f32."""
    KH, KW, Cin, Cout = w.shape
    N = x.shape[0]
    if KH == 1 and KW == 1:
        # 1x1 conv: no im2col, just (strided) reshape -> matmul.
        if stride > 1:
            x = x[:, ::stride, ::stride, :]
        OH, OW = x.shape[1], x.shape[2]
        a = x.reshape(N * OH * OW, Cin)
    else:
        a, OH, OW = im2col(x, KH, KW, stride, pad)
    a = a.astype(jnp.bfloat16)                      # bf16 MXU operands only
    wm = w.reshape(KH * KW * Cin, Cout)
    ident = None if identity is None else identity.reshape(-1, Cout)
    out = matmul_fused(a, wm, bias.reshape(1, Cout), relu=relu, identity=ident)
    return out.reshape(N, OH, OW, Cout)


def maxpool_3x3_s2_p1(x):
    """MaxPool2d(kernel=3, stride=2, padding=1), NHWC."""
    # TODO(synk): read the padded NHWC activation once inside a Pallas kernel
    #             instead of materializing 9 strided slices.
    N, H, W, C = x.shape
    OH = (H + 2 - 3) // 2 + 1
    OW = (W + 2 - 3) // 2 + 1
    xp = jnp.pad(x, ((0, 0), (1, 1), (1, 1), (0, 0)),
                 constant_values=-jnp.inf)
    slices = [xp[:, i:i + 2 * OH:2, j:j + 2 * OW:2, :]
              for i in range(3) for j in range(3)]
    stacked = jnp.stack(slices, axis=0).reshape(9, N * OH * OW, C)
    return max9(stacked).reshape(N, OH, OW, C)


# ------------------------ jitted stages (few dispatches) ---------------------

@jax.jit
def stem_forward(x_nchw, w, b):
    if x_nchw.shape[1] == 1:                        # grayscale -> replicate
        x_nchw = jnp.concatenate([x_nchw, x_nchw, x_nchw], axis=1)
    x = jnp.transpose(x_nchw, (0, 2, 3, 1))         # NCHW -> NHWC
    x = conv_bn(x, w, b, stride=2, pad=3, relu=True)
    return maxpool_3x3_s2_p1(x)


@functools.partial(jax.jit, static_argnames=("stride",))
def bottleneck_forward(x, blk, *, stride):
    out = conv_bn(x, blk["w1"], blk["b1"], stride=1, pad=0, relu=True)
    out = conv_bn(out, blk["w2"], blk["b2"], stride=stride, pad=1, relu=True)
    if "dw" in blk:
        identity = conv_bn(x, blk["dw"], blk["db"],
                           stride=stride, pad=0, relu=False)
    else:
        identity = x
    # conv3 + BN + residual add + ReLU fused into one Pallas kernel epilogue.
    return conv_bn(out, blk["w3"], blk["b3"], stride=1, pad=0, relu=True,
                   identity=identity)


@jax.jit
def flatten_nchw(x_nhwc):
    # output.view(N, -1) in torch flattens NCHW order.
    out_nchw = jnp.transpose(x_nhwc, (0, 3, 1, 2))
    return out_nchw.reshape(out_nchw.shape[0], -1)


# --------------------------- Parameter construction -------------------------

class KeyGen:
    def __init__(self, key):
        self.key = key

    def __call__(self):
        self.key, sub = jax.random.split(self.key)
        return sub


def make_conv(kg, kh, kw, cin, cout, scale_mult=1.0):
    # Stored as (KH, KW, Cin, Cout) — transposed equivalent of torch's
    # (Cout, Cin, KH, KW); same parameter count/shape semantics.
    fan_in = kh * kw * cin
    std = scale_mult * (2.0 / fan_in) ** 0.5
    return jax.random.normal(kg(), (kh, kw, cin, cout), jnp.float32) * std


def make_bn(kg, c, eps=1e-5):
    gamma = 1.0 + 0.01 * jax.random.normal(kg(), (c,), jnp.float32)
    beta = 0.01 * jax.random.normal(kg(), (c,), jnp.float32)
    mean = 0.01 * jax.random.normal(kg(), (c,), jnp.float32)
    var = 1.0 + 0.01 * jnp.abs(jax.random.normal(kg(), (c,), jnp.float32))
    scale = gamma / jnp.sqrt(var + eps)          # eval-mode fused BN
    bias = beta - mean * scale
    return scale, bias


def init_resnet101_params(key):
    kg = KeyGen(key)
    params = {
        "conv1": make_conv(kg, 7, 7, 3, 64),
        "bn1": make_bn(kg, 64),
    }
    layers_cfg = [(64, 3, 1), (128, 4, 2), (256, 23, 2), (512, 3, 2)]
    inplanes = 64
    layers = []
    for planes, nblocks, stride in layers_cfg:
        blocks = []
        for b in range(nblocks):
            s = stride if b == 0 else 1
            blk = {
                "conv1": make_conv(kg, 1, 1, inplanes, planes),
                "bn1": make_bn(kg, planes),
                "conv2": make_conv(kg, 3, 3, planes, planes),
                "bn2": make_bn(kg, planes),
                # small scale on the last conv keeps the 33-block residual
                # stack numerically tame under random init
                "conv3": make_conv(kg, 1, 1, planes, planes * 4, scale_mult=0.1),
                "bn3": make_bn(kg, planes * 4),
            }
            if s != 1 or inplanes != planes * 4:
                blk["down_conv"] = make_conv(kg, 1, 1, inplanes, planes * 4)
                blk["down_bn"] = make_bn(kg, planes * 4)
            blocks.append(blk)
            inplanes = planes * 4
        layers.append(blocks)
    params["layers"] = layers
    return params


def _fold_bn_into_conv(w, bn):
    """Eval-mode BN: (x*w)*scale + bias == x*(w*scale) + bias. Weights -> bf16."""
    scale, bias = bn
    w_folded = (w * scale.reshape(1, 1, 1, -1)).astype(jnp.bfloat16)
    return w_folded, bias.astype(jnp.float32)


def prepare_params(raw):
    """Fold BN scale into (frozen) conv weights, cast MXU operands to bf16."""
    w1, b1 = _fold_bn_into_conv(raw["conv1"], raw["bn1"])
    prepared = {"conv1_w": w1, "conv1_b": b1, "layers": []}
    for blocks in raw["layers"]:
        pblocks = []
        for blk in blocks:
            p = {}
            p["w1"], p["b1"] = _fold_bn_into_conv(blk["conv1"], blk["bn1"])
            p["w2"], p["b2"] = _fold_bn_into_conv(blk["conv2"], blk["bn2"])
            p["w3"], p["b3"] = _fold_bn_into_conv(blk["conv3"], blk["bn3"])
            if "down_conv" in blk:
                p["dw"], p["db"] = _fold_bn_into_conv(blk["down_conv"],
                                                      blk["down_bn"])
            pblocks.append(p)
        prepared["layers"].append(pblocks)
    return prepared


# ------------------------------- Forward pass --------------------------------

def resnet101_feature_extractor(x_nchw, params):
    # children[:8] = conv1, bn1, relu, maxpool, layer1..layer4
    x = stem_forward(x_nchw, params["conv1_w"], params["conv1_b"])
    layer_strides = (1, 2, 2, 2)
    for li, blocks in enumerate(params["layers"]):
        for bi, blk in enumerate(blocks):
            s = layer_strides[li] if bi == 0 else 1
            x = bottleneck_forward(x, blk, stride=s)
    return flatten_nchw(x)


# ----------------------------------- Main ------------------------------------

if __name__ == "__main__":
    key = jax.random.PRNGKey(0)
    pkey, xkey = jax.random.split(key)

    params = prepare_params(init_resnet101_params(pkey))
    # small spatial input (NCHW like PyTorch); 32x32 -> 1x1x2048 features
    x = jax.random.normal(xkey, (2, 3, 32, 32), jnp.float32)

    out = resnet101_feature_extractor(x, params)
    out = jax.block_until_ready(out)

    assert out.shape == (2, 2048), out.shape
    print("KERNEL_OK")
</pallas_src>

<mosaic_0001>
module attributes {stable_mosaic.version = 11 : i64} {
  func.func @_matmul_bias_kernel(%arg0: i32, %arg1: i32, %arg2: memref<256x147xbf16, #tpu.memory_space<vmem>>, %arg3: memref<147x64xbf16, #tpu.memory_space<vmem>>, %arg4: memref<1x64xf32, #tpu.memory_space<vmem>>, %arg5: memref<256x64xf32, #tpu.memory_space<vmem>>) attributes {dimension_semantics = [#tpu.dimension_semantics<parallel>, #tpu.dimension_semantics<parallel>], iteration_bounds = array<i64: 2, 1>, scalar_prefetch = 0 : i64, scratch_operands = 0 : i64, tpu.core_type = #tpu.core_type<tc>, window_params = [{transform_indices = @transform_0, window_bounds = array<i64: 256, 147>}, {transform_indices = @transform_1, window_bounds = array<i64: 147, 64>}, {transform_indices = @transform_2, window_bounds = array<i64: 1, 64>}, {transform_indices = @transform_3, window_bounds = array<i64: 256, 64>}]} {
    %c0 = arith.constant 0 : index
    %c0_0 = arith.constant 0 : index
    %0 = vector.load %arg2[%c0, %c0_0] : memref<256x147xbf16, #tpu.memory_space<vmem>>, vector<256x147xbf16>
    %c0_1 = arith.constant 0 : index
    %c0_2 = arith.constant 0 : index
    %1 = vector.load %arg3[%c0_1, %c0_2] : memref<147x64xbf16, #tpu.memory_space<vmem>>, vector<147x64xbf16>
    %cst = arith.constant dense<0.000000e+00> : vector<256x64xf32>
    %2 = tpu.matmul %0, %1, %cst {dimension_numbers = #tpu.dot_dimension_numbers<[1], [0], [0], [1], [0, 0, 1, 1], [], []>} : vector<256x147xbf16>, vector<147x64xbf16>, vector<256x64xf32> -> vector<256x64xf32>
    %c0_3 = arith.constant 0 : index
    %c0_4 = arith.constant 0 : index
    %3 = vector.load %arg4[%c0_3, %c0_4] : memref<1x64xf32, #tpu.memory_space<vmem>>, vector<1x64xf32>
    %4 = vector.broadcast %3 : vector<1x64xf32> to vector<256x64xf32>
    %5 = arith.addf %2, %4 : vector<256x64xf32>
    %cst_5 = arith.constant 0.000000e+00 : f32
    %6 = vector.broadcast %cst_5 : f32 to vector<256x64xf32>
    %7 = arith.maximumf %5, %6 : vector<256x64xf32>
    %c0_6 = arith.constant 0 : index
    %c0_7 = arith.constant 0 : index
    %8 = vector.load %arg5[%c0_6, %c0_7] : memref<256x64xf32, #tpu.memory_space<vmem>>, vector<256x64xf32>
    tpu.vector_store %arg5[%c0_6, %c0_7], %7 {strides = array<i32>} : memref<256x64xf32, #tpu.memory_space<vmem>>, vector<256x64xf32>,
    return
  }
  func.func @transform_0(%arg0: i32, %arg1: i32) -> (i32, i32) {
    %c0_i32 = arith.constant 0 : i32
    %c0_i32_0 = arith.constant 0 : i32
    return %arg0, %c0_i32 : i32, i32
  }
  func.func @transform_1(%arg0: i32, %arg1: i32) -> (i32, i32) {
    %c0_i32 = arith.constant 0 : i32
    %c0_i32_0 = arith.constant 0 : i32
    return %c0_i32, %arg1 : i32, i32
  }
  func.func @transform_2(%arg0: i32, %arg1: i32) -> (i32, i32) {
    %c0_i32 = arith.constant 0 : i32
    %c0_i32_0 = arith.constant 0 : i32
    return %c0_i32, %arg1 : i32, i32
  }
  func.func @transform_3(%arg0: i32, %arg1: i32) -> (i32, i32) {
    %c0_i32 = arith.constant 0 : i32
    return %arg0, %arg1 : i32, i32
  }
}

module attributes {stable_mosaic.version = 11 : i64} {
  func.func @_max9_kernel(%arg0: i32, %arg1: memref<9x128x64xf32, #tpu.memory_space<vmem>>, %arg2: memref<128x64xf32, #tpu.memory_space<vmem>>) attributes {dimension_semantics = [#tpu.dimension_semantics<parallel>], iteration_bounds = array<i64: 1>, scalar_prefetch = 0 : i64, scratch_operands = 0 : i64, tpu.core_type = #tpu.core_type<tc>, window_params = [{transform_indices = @transform_0, window_bounds = array<i64: 9, 128, 64>}, {transform_indices = @transform_1, window_bounds = array<i64: 128, 64>}]} {
    %c0 = arith.constant 0 : index
    %c0_0 = arith.constant 0 : index
    %c0_1 = arith.constant 0 : index
    %0 = vector.load %arg1[%c0, %c0_0, %c0_1] : memref<9x128x64xf32, #tpu.memory_space<vmem>>, vector<1x128x64xf32>
    %1 = vector.shape_cast %0 : vector<1x128x64xf32> to vector<128x64xf32>
    %c1 = arith.constant 1 : index
    %c0_2 = arith.constant 0 : index
    %c0_3 = arith.constant 0 : index
    %2 = vector.load %arg1[%c1, %c0_2, %c0_3] : memref<9x128x64xf32, #tpu.memory_space<vmem>>, vector<1x128x64xf32>
    %3 = vector.shape_cast %2 : vector<1x128x64xf32> to vector<128x64xf32>
    %4 = arith.maximumf %1, %3 : vector<128x64xf32>
    %c2 = arith.constant 2 : index
    %c0_4 = arith.constant 0 : index
    %c0_5 = arith.constant 0 : index
    %5 = vector.load %arg1[%c2, %c0_4, %c0_5] : memref<9x128x64xf32, #tpu.memory_space<vmem>>, vector<1x128x64xf32>
    %6 = vector.shape_cast %5 : vector<1x128x64xf32> to vector<128x64xf32>
    %7 = arith.maximumf %4, %6 : vector<128x64xf32>
    %c3 = arith.constant 3 : index
    %c0_6 = arith.constant 0 : index
    %c0_7 = arith.constant 0 : index
    %8 = vector.load %arg1[%c3, %c0_6, %c0_7] : memref<9x128x64xf32, #tpu.memory_space<vmem>>, vector<1x128x64xf32>
    %9 = vector.shape_cast %8 : vector<1x128x64xf32> to vector<128x64xf32>
    %10 = arith.maximumf %7, %9 : vector<128x64xf32>
    %c4 = arith.constant 4 : index
    %c0_8 = arith.constant 0 : index
    %c0_9 = arith.constant 0 : index
    %11 = vector.load %arg1[%c4, %c0_8, %c0_9] : memref<9x128x64xf32, #tpu.memory_space<vmem>>, vector<1x128x64xf32>
    %12 = vector.shape_cast %11 : vector<1x128x64xf32> to vector<128x64xf32>
    %13 = arith.maximumf %10, %12 : vector<128x64xf32>
    %c5 = arith.constant 5 : index
    %c0_10 = arith.constant 0 : index
    %c0_11 = arith.constant 0 : index
    %14 = vector.load %arg1[%c5, %c0_10, %c0_11] : memref<9x128x64xf32, #tpu.memory_space<vmem>>, vector<1x128x64xf32>
    %15 = vector.shape_cast %14 : vector<1x128x64xf32> to vector<128x64xf32>
    %16 = arith.maximumf %13, %15 : vector<128x64xf32>
    %c6 = arith.constant 6 : index
    %c0_12 = arith.constant 0 : index
    %c0_13 = arith.constant 0 : index
    %17 = vector.load %arg1[%c6, %c0_12, %c0_13] : memref<9x128x64xf32, #tpu.memory_space<vmem>>, vector<1x128x64xf32>
    %18 = vector.shape_cast %17 : vector<1x128x64xf32> to vector<128x64xf32>
    %19 = arith.maximumf %16, %18 : vector<128x64xf32>
    %c7 = arith.constant 7 : index
    %c0_14 = arith.constant 0 : index
    %c0_15 = arith.constant 0 : index
    %20 = vector.load %arg1[%c7, %c0_14, %c0_15] : memref<9x128x64xf32, #tpu.memory_space<vmem>>, vector<1x128x64xf32>
    %21 = vector.shape_cast %20 : vector<1x128x64xf32> to vector<128x64xf32>
    %22 = arith.maximumf %19, %21 : vector<128x64xf32>
    %c8 = arith.constant 8 : index
    %c0_16 = arith.constant 0 : index
    %c0_17 = arith.constant 0 : index
    %23 = vector.load %arg1[%c8, %c0_16, %c0_17] : memref<9x128x64xf32, #tpu.memory_space<vmem>>, vector<1x128x64xf32>
    %24 = vector.shape_cast %23 : vector<1x128x64xf32> to vector<128x64xf32>
    %25 = arith.maximumf %22, %24 : vector<128x64xf32>
    %c0_18 = arith.constant 0 : index
    %c0_19 = arith.constant 0 : index
    %26 = vector.load %arg2[%c0_18, %c0_19] : memref<128x64xf32, #tpu.memory_space<vmem>>, vector<128x64xf32>
    tpu.vector_store %arg2[%c0_18, %c0_19], %25 {strides = array<i32>} : memref<128x64xf32, #tpu.memory_space<vmem>>, vector<128x64xf32>,
    return
  }
  func.func @transform_0(%arg0: i32) -> (i32, i32, i32) {
    %c0_i32 = arith.constant 0 : i32
    %c0_i32_0 = arith.constant 0 : i32
    %c0_i32_1 = arith.constant 0 : i32
    return %c0_i32, %arg0, %c0_i32_0 : i32, i32, i32
  }
  func.func @transform_1(%arg0: i32) -> (i32, i32) {
    %c0_i32 = arith.constant 0 : i32
    %c0_i32_0 = arith.constant 0 : i32
    return %arg0, %c0_i32 : i32, i32
  }
}

</mosaic_0001>

<llo_original>
// kernel: stem_forward.2
$region0: #{stem_forward.2}
  #allocation0 [shape = 'u32[]', space=smem, size = 0x4, offset = 0x4, fixed_abs, tag = 'smem constant byte address 0x4 - core index']
  #allocation1 [shape = 'u32[144,128]{1,0:T(1,128)}', space=vmem, size = 0x12000, scoped, tag = 'internal scratch']
  %s0 = inlined_call_operand.vmem [shape: bf16[512,147], index: 0, kind: input, shape index: {}]
  %s1 = inlined_call_operand.vmem [shape: bf16[147,64], index: 1, kind: input, shape index: {}]
  %s2 = inlined_call_operand.vmem [shape: f32[1,64], index: 2, kind: input, shape index: {}]
  %s3 = inlined_call_operand.vmem [shape: f32[512,64], index: 3, kind: output, shape index: {}]
  %s4 = sld [smem:[#allocation0]]
  $region45: #{stem_forward.2} parent=0
    _
  %s6 = ssub.s32 1, %s4
  %s7 = scalar_select 0, %s6, %s4
  loop: start=0, step=1, limit=4
  $region2: #{stem_forward.2} parent=0 // loop_pre_header
    _
  $region3: #{stem_forward.2} parent=0 // loop_header
    %s9 = sphi 0, %s13
    %p10 = scmp.ge.s32.totalorder %s9, 4
    %s16 = sphi 0, %s28
    %s17 = sphi 0, %s24
    %s18 = sphi 0, %s16
    %s19 = sphi 0, %s17
    %s20 = sphi 0, %s18
    %s21 = sphi 0, %s19
    %s31 = sphi 0, %s33
    %s34 = sphi 0, %s31
    %s35 = sphi 0, %s34
    %s51 = sphi 0, %s35
    %s57 = sphi 0, %s59
    %s60 = sphi 0, %s57
    %s61 = sphi 0, %s60
    %s77 = sphi 0, %s61
    %s83 = sphi 0, %s85
    %s86 = sphi 0, %s83
    %s87 = sphi 0, %s86
    %s103 = sphi 0, %s87
    %s111 = sphi 0, %s113
    %s114 = sphi 0, %s111
    %s115 = sphi 0, %s114
    %s131 = sphi 0, %s115
  $region4: #{stem_forward.2} parent=0 // loop_header_branch
    %12 = sbr.rel (%p10) target = $region8
  $region5: #{stem_forward.2} parent=0 // loop_body
    %s14 = ssub.s32 %s9, 1
    %s15 = ssub.s32 %s9, 2
    %s22 = sadd.s32 1, %s17
    %p23 = scmp.ge.s32.totalorder %s22, 1
    %s24 = scalar_select %p23, 0, %s22
    %s25 = sadd.s32 1, %s16
    %s26 = scalar_select %p23, %s25, %s16
    %p27 = scmp.ge.s32.totalorder %s26, 2
    %s28 = scalar_select %p27, 0, %s26
    %s29 = ssub.s32 %s16, %s28
    %p30 = scmp.eq.s32.totalorder %s29, 0
    %s32 = sadd.s32 %s31, 1
    %s33 = scalar_select %p30, %s31, %s32
    %p36 = pneg %p30
    %p37 = scmp.eq.s32.totalorder %s9, 1
    %p38 = por %p36, %p37
    %p39 = scmp.ne.s32.totalorder %s31, %s34
    %p40 = scmp.eq.s32.totalorder %s9, 0
    %p41 = por %p39, %p40
    %p42 = scmp.ne.s32.totalorder %s31, %s34
    %p43 = scmp.eq.s32.totalorder %s14, 1
    %p44 = por %p42, %p43
    %p45 = scmp.ne.s32.totalorder %s34, %s35
    %p46 = scmp.eq.s32.totalorder %s14, 0
    %p47 = por %p45, %p46
    %p48 = scmp.ne.s32.totalorder %s34, %s35
    %p49 = scmp.eq.s32.totalorder %s15, 1
    %p50 = por %p48, %p49
    %p52 = scmp.ne.s32.totalorder %s35, %s51
    %p53 = scmp.eq.s32.totalorder %s15, 0
    %p54 = por %p52, %p53
    %s55 = ssub.s32 %s17, %s24
    %p56 = scmp.eq.s32.totalorder %s55, 0
    %s58 = sadd.s32 %s57, 1
    %s59 = scalar_select %p56, %s57, %s58
    %p62 = pneg %p56
    %p63 = scmp.eq.s32.totalorder %s9, 1
    %p64 = por %p62, %p63
    %p65 = scmp.ne.s32.totalorder %s57, %s60
    %p66 = scmp.eq.s32.totalorder %s9, 0
    %p67 = por %p65, %p66
    %p68 = scmp.ne.s32.totalorder %s57, %s60
    %p69 = scmp.eq.s32.totalorder %s14, 1
    %p70 = por %p68, %p69
    %p71 = scmp.ne.s32.totalorder %s60, %s61
    %p72 = scmp.eq.s32.totalorder %s14, 0
    %p73 = por %p71, %p72
    %p74 = scmp.ne.s32.totalorder %s60, %s61
    %p75 = scmp.eq.s32.totalorder %s15, 1
    %p76 = por %p74, %p75
    %p78 = scmp.ne.s32.totalorder %s61, %s77
    %p79 = scmp.eq.s32.totalorder %s15, 0
    %p80 = por %p78, %p79
    %s81 = ssub.s32 %s17, %s24
    %p82 = scmp.eq.s32.totalorder %s81, 0
    %s84 = sadd.s32 %s83, 1
    %s85 = scalar_select %p82, %s83, %s84
    %p88 = pneg %p82
    %p89 = scmp.eq.s32.totalorder %s9, 1
    %p90 = por %p88, %p89
    %p91 = scmp.ne.s32.totalorder %s83, %s86
    %p92 = scmp.eq.s32.totalorder %s9, 0
    %p93 = por %p91, %p92
    %p94 = scmp.ne.s32.totalorder %s83, %s86
    %p95 = scmp.eq.s32.totalorder %s14, 1
    %p96 = por %p94, %p95
    %p97 = scmp.ne.s32.totalorder %s86, %s87
    %p98 = scmp.eq.s32.totalorder %s14, 0
    %p99 = por %p97, %p98
    %p100 = scmp.ne.s32.totalorder %s86, %s87
    %p101 = scmp.eq.s32.totalorder %s15, 1
    %p102 = por %p100, %p101
    %p104 = scmp.ne.s32.totalorder %s87, %s103
    %p105 = scmp.eq.s32.totalorder %s15, 0
    %p106 = por %p104, %p105
    %s107 = ssub.s32 %s16, %s28
    %s108 = ssub.s32 %s17, %s24
    %s109 = sor.u32 %s107, %s108
    %p110 = scmp.eq.s32.totalorder %s109, 0
    %s112 = sadd.s32 %s111, 1
    %s113 = scalar_select %p110, %s111, %s112
    %p116 = pneg %p110
    %p117 = scmp.eq.s32.totalorder %s9, 1
    %p118 = por %p116, %p117
    %p119 = scmp.ne.s32.totalorder %s111, %s114
    %p120 = scmp.eq.s32.totalorder %s9, 0
    %p121 = por %p119, %p120
    %p122 = scmp.ne.s32.totalorder %s111, %s114
    %p123 = scmp.eq.s32.totalorder %s14, 1
    %p124 = por %p122, %p123
    %p125 = scmp.ne.s32.totalorder %s114, %s115
    %p126 = scmp.eq.s32.totalorder %s14, 0
    %p127 = por %p125, %p126
    %p128 = scmp.ne.s32.totalorder %s114, %s115
    %p129 = scmp.eq.s32.totalorder %s15, 1
    %p130 = por %p128, %p129
    %p132 = scmp.ne.s32.totalorder %s115, %s131
    %p133 = scmp.eq.s32.totalorder %s15, 0
    %p134 = por %p132, %p133
    %p135 = scmp.le.s32.totalorder 1, %s9
    %p136 = scmp.lt.s32.totalorder %s9, 3
    %p137 = pnand %p135, %p136
    %p138 = pneg %p137
    // Predicated region
    $region9: #{stem_forward.2} parent=5 // pred_check
      _
    $region10: #{stem_forward.2} parent=5 // pred_check_branch
      %140 = sbr.rel (%p137) target = $region12
    $region11: #{stem_forward.2} parent=5 // pred_region
      %s141 = ssub.s32 %s9, 1
      // Predicated region
      $region13: #{stem_forward.2} parent=11 // pred_check
        %p142 = pneg %p73
      $region14: #{stem_forward.2} parent=11 // pred_check_branch
        %144 = sbr.rel (%p142) target = $region16
      $region15: #{stem_forward.2} parent=11 // pred_region
        %p145 = scmp.lt.s32.totalorder %s19, 0
        %s146 = scalar_select %p145, %s19, 0
        %s147 = smul.addr %s146, 4
        %s148 = scalar_lea.vmem %s1, %s147
      $region16: #{stem_forward.2} parent=11 // pred_fallthru
        _
      // Predicated region
      $region17: #{stem_forward.2} parent=11 // pred_check
        %p149 = pneg %p99
      $region18: #{stem_forward.2} parent=11 // pred_check_branch
        %151 = sbr.rel (%p149) target = $region20
      $region19: #{stem_forward.2} parent=11 // pred_region
        %p152 = scmp.lt.s32.totalorder %s19, 0
        %s153 = scalar_select %p152, %s19, 0
        %s154 = scalar_lea.vmem %s2, %s153
      $region20: #{stem_forward.2} parent=11 // pred_fallthru
        _
    $region12: #{stem_forward.2} parent=5 // pred_fallthru
      _
    %p155 = scmp.lt.s32.totalorder %s9, 2
    // Predicated region
    $region21: #{stem_forward.2} parent=5 // pred_check
      %p156 = pneg %p155
    $region22: #{stem_forward.2} parent=5 // pred_check_branch
      %158 = sbr.rel (%p156) target = $region24
    $region23: #{stem_forward.2} parent=5 // pred_region
      // Predicated region
      $region25: #{stem_forward.2} parent=23 // pred_check
        %p159 = pneg %p41
      $region26: #{stem_forward.2} parent=23 // pred_check_branch
        %161 = sbr.rel (%p159) target = $region28
      $region27: #{stem_forward.2} parent=23 // pred_region
        %s162 = smul.u32 32, %s16
        %p163 = scmp.lt.s32.totalorder %s162, 63
        %s164 = scalar_select %p163, %s162, 63
        %s165 = smul.addr %s164, 2
        %s166 = smul.addr %s165, 4
        %s167 = scalar_lea.vmem %s0, %s166
        %s168 = smul.u32 32, %s16
      $region28: #{stem_forward.2} parent=23 // pred_fallthru
        _
    $region24: #{stem_forward.2} parent=5 // pred_fallthru
      _
    %p169 = scmp.le.s32.totalorder 1, %s9
    %p170 = scmp.lt.s32.totalorder %s9, 3
    %p171 = pnand %p169, %p170
    %p172 = pneg %p171
    // Predicated region
    $region29: #{stem_forward.2} parent=5 // pred_check
      _
    $region30: #{stem_forward.2} parent=5 // pred_check_branch
      %174 = sbr.rel (%p171) target = $region32
    $region31: #{stem_forward.2} parent=5 // pred_region
      %s175 = ssub.s32 %s9, 1
      %s176 = smul.u32 32, %s18
      %p177 = scmp.lt.s32.totalorder %s176, 63
      %s178 = scalar_select %p177, %s176, 63
      %s179 = smul.addr %s178, 2
      %s180 = smul.addr %s179, 4
      %s181 = scalar_lea.vmem %s0, %s180
      %p182 = pneg %p47
      %p183 = pneg %p44
      %p184 = scmp.lt.s32.totalorder %s19, 0
      %s185 = scalar_select %p184, %s19, 0
      %s186 = smul.addr %s185, 4
      %s187 = scalar_lea.vmem %s1, %s186
      %p188 = pneg %p73
      %p189 = pneg %p70
      %p190 = scmp.lt.s32.totalorder %s19, 0
      %s191 = scalar_select %p190, %s19, 0
      %s192 = scalar_lea.vmem %s2, %s191
      %p193 = pneg %p99
      %p194 = pneg %p96
      %p195 = pneg %p127
      %p196 = pneg %p124
      %s197 = smul.u32 32, %s18
      %p198 = scmp.lt.s32.totalorder %s197, 63
      %s199 = scalar_select %p198, %s197, 63
      %p200 = scmp.lt.s32.totalorder %s19, 0
      %s201 = scalar_select %p200, %s19, 0
      %s202 = sadd.s32 %s201, %s199
      %s203 = smul.addr %s202, 8
      %s204 = scalar_lea.vmem %s3, %s203
      %s205 = smul.u32 32, %s18
      %p206 = scmp.lt.s32.totalorder %s205, 63
      %s207 = scalar_select %p206, %s205, 63
      %s208 = smul.addr %s207, 2
      %s209 = smul.addr %s208, 4
      %s210 = scalar_lea.vmem %s0, %s209
      %s211 = smul.u32 32, %s18
      %p212 = scmp.lt.s32.totalorder %s19, 0
      %s213 = scalar_select %p212, %s19, 0
      %s214 = smul.addr %s213, 4
      %s215 = scalar_lea.vmem %s1, %s214
      %p216 = scmp.lt.s32.totalorder %s19, 0
      %s217 = scalar_select %p216, %s19, 0
      %s218 = scalar_lea.vmem %s2, %s217
      %s219 = smul.u32 32, %s18
      %p220 = scmp.lt.s32.totalorder %s219, 63
      %s221 = scalar_select %p220, %s219, 63
      %p222 = scmp.lt.s32.totalorder %s19, 0
      %s223 = scalar_select %p222, %s19, 0
      %s224 = sadd.s32 %s223, %s221
      %s225 = smul.addr %s224, 8
      %s226 = scalar_lea.vmem %s3, %s225
      %s227 = smul.u32 32, %s18
      %v229 = vld [vmem:[%s210] sm:$0xff]
      %v230 = vld [vmem:[%s210 + $0x8] sm:$0xff]
      %v231 = vld [vmem:[%s210 + $0x10] sm:$0xff]
      %v232 = vld [vmem:[%s210 + $0x18] sm:$0xff]
      %v233 = vld [vmem:[%s210 + $0x20] sm:$0xff]
      %v234 = vld [vmem:[%s210 + $0x28] sm:$0xff]
      %v235 = vld [vmem:[%s210 + $0x30] sm:$0xff]
      %v236 = vld [vmem:[%s210 + $0x38] sm:$0xff]
      %v237 = vld [vmem:[%s210 + $0x40] sm:$0xff]
      %v238 = vld [vmem:[%s210 + $0x48] sm:$0xff]
      %v239 = vld [vmem:[%s210 + $0x50] sm:$0xff]
      %v240 = vld [vmem:[%s210 + $0x58] sm:$0xff]
      %v241 = vld [vmem:[%s210 + $0x60] sm:$0xff]
      %v242 = vld [vmem:[%s210 + $0x68] sm:$0xff]
      %v243 = vld [vmem:[%s210 + $0x70] sm:$0xff]
      %v244 = vld [vmem:[%s210 + $0x78] sm:$0xff]
      %v245 = vld [vmem:[%s210 + $0x80] sm:$0xff]
      %v246 = vld [vmem:[%s210 + $0x88] sm:$0xff]
      %v247 = vld [vmem:[%s210 + $0x90] sm:$0xff]
      %v248 = vld [vmem:[%s210 + $0x98] sm:$0xff]
      %v249 = vld [vmem:[%s210 + $0xa0] sm:$0xff]
      %v250 = vld [vmem:[%s210 + $0xa8] sm:$0xff]
      %v251 = vld [vmem:[%s210 + $0xb0] sm:$0xff]
      %v252 = vld [vmem:[%s210 + $0xb8] sm:$0xff]
      %v253 = vld [vmem:[%s210 + $0xc0] sm:$0xff]
      %v254 = vld [vmem:[%s210 + $0xc8] sm:$0xff]
      %v255 = vld [vmem:[%s210 + $0xd0] sm:$0xff]
      %v256 = vld [vmem:[%s210 + $0xd8] sm:$0xff]
      %v257 = vld [vmem:[%s210 + $0xe0] sm:$0xff]
      %v258 = vld [vmem:[%s210 + $0xe8] sm:$0xff]
      %v259 = vld [vmem:[%s210 + $0xf0] sm:$0xff]
      %v260 = vld [vmem:[%s210 + $0xf8] sm:$0xff]
      %v261 = vld [vmem:[%s215] sm:$0xf]
      %v262 = vld [vmem:[%s215 + $0x4] sm:$0xf]
      %v263 = vld [vmem:[%s215 + $0x8] sm:$0xf]
      %v264 = vld [vmem:[%s215 + $0xc] sm:$0xf]
      %v265 = vld [vmem:[%s215 + $0x10] sm:$0xf]
      %v266 = vld [vmem:[%s215 + $0x14] sm:$0xf]
      %v267 = vld [vmem:[%s215 + $0x18] sm:$0xf]
      %v268 = vld [vmem:[%s215 + $0x1c] sm:$0xf]
      %v269 = vld [vmem:[%s215 + $0x20] sm:$0xf]
      %v270 = vld [vmem:[%s215 + $0x24] sm:$0xf]
      %v271 = vld [vmem:[%s215 + $0x28] sm:$0xf]
      %v272 = vld [vmem:[%s215 + $0x2c] sm:$0xf]
      %v273 = vld [vmem:[%s215 + $0x30] sm:$0xf]
      %v274 = vld [vmem:[%s215 + $0x34] sm:$0xf]
      %v275 = vld [vmem:[%s215 + $0x38] sm:$0xf]
      %v276 = vld [vmem:[%s215 + $0x3c] sm:$0xf]
      %v277 = vld [vmem:[%s215 + $0x40] sm:$0xf]
      %v278 = vld [vmem:[%s215 + $0x44] sm:$0xf]
      %v279 = vld [vmem:[%s215 + $0x48] sm:$0x3]
      %v280 = vld [vmem:[%s218] sm:$0x1]
      %v282 = vlaneseq
      %v283 = vshrl.u32 %v282, 7
      %v284 = vsub.s32 0, %v283
      %v285 = vrot.slane %v280, %v284
      %v319 = vunpack.c.l.b16 %v229
      %v320 = vunpack.c.h.b16 %v229
      %v321 = vunpack.c.l.b16 %v230
      %v322 = vunpack.c.h.b16 %v230
      %v323 = vunpack.c.l.b16 %v231
      %v324 = vunpack.c.h.b16 %v231
      %v325 = vunpack.c.l.b16 %v232
      %v326 = vunpack.c.h.b16 %v232
      %v327 = vunpack.c.l.b16 %v233
      %v328 = vunpack.c.h.b16 %v233
      %v329 = vunpack.c.l.b16 %v234
      %v330 = vunpack.c.h.b16 %v234
      %v331 = vunpack.c.l.b16 %v235
      %v332 = vunpack.c.h.b16 %v235
      %v333 = vunpack.c.l.b16 %v236
      %v334 = vunpack.c.h.b16 %v236
      %v335 = vunpack.c.l.b16 %v237
      %v336 = vunpack.c.h.b16 %v237
      %v337 = vunpack.c.l.b16 %v238
      %v338 = vunpack.c.h.b16 %v238
      %v339 = vunpack.c.l.b16 %v239
      %v340 = vunpack.c.h.b16 %v239
      %v341 = vunpack.c.l.b16 %v240
      %v342 = vunpack.c.h.b16 %v240
      %v343 = vunpack.c.l.b16 %v241
      %v344 = vunpack.c.h.b16 %v241
      %v345 = vunpack.c.l.b16 %v242
      %v346 = vunpack.c.h.b16 %v242
      %v347 = vunpack.c.l.b16 %v243
      %v348 = vunpack.c.h.b16 %v243
      %v349 = vunpack.c.l.b16 %v244
      %v350 = vunpack.c.h.b16 %v244
      %v351 = vunpack.c.l.b16 %v245
      %v352 = vunpack.c.h.b16 %v245
      %v353 = vunpack.c.l.b16 %v246
      %v354 = vunpack.c.h.b16 %v246
      %v355 = vunpack.c.l.b16 %v247
      %v356 = vunpack.c.h.b16 %v247
      %v357 = vunpack.c.l.b16 %v248
      %v358 = vunpack.c.h.b16 %v248
      %v359 = vunpack.c.l.b16 %v249
      %v360 = vunpack.c.h.b16 %v249
      %v361 = vunpack.c.l.b16 %v250
      %v362 = vunpack.c.h.b16 %v250
      %v363 = vunpack.c.l.b16 %v251
      %v364 = vunpack.c.h.b16 %v251
      %v365 = vunpack.c.l.b16 %v252
      %v366 = vunpack.c.h.b16 %v252
      %v367 = vunpack.c.l.b16 %v253
      %v368 = vunpack.c.h.b16 %v253
      %v369 = vunpack.c.l.b16 %v254
      %v370 = vunpack.c.h.b16 %v254
      %v371 = vunpack.c.l.b16 %v255
      %v372 = vunpack.c.h.b16 %v255
      %v373 = vunpack.c.l.b16 %v256
      %v374 = vunpack.c.h.b16 %v256
      %v375 = vunpack.c.l.b16 %v257
      %v376 = vunpack.c.h.b16 %v257
      %v377 = vunpack.c.l.b16 %v258
      %v378 = vunpack.c.h.b16 %v258
      %v379 = vunpack.c.l.b16 %v259
      %v380 = vunpack.c.h.b16 %v259
      %v381 = vunpack.c.l.b16 %v260
      %v382 = vunpack.c.h.b16 %v260
      %v383 = vpack.c.b16 %v321, %v319
      %v384 = vpack.c.b16 %v322, %v320
      %v385 = vpack.c.b16 %v325, %v323
      %v386 = vpack.c.b16 %v326, %v324
      %v387 = vpack.c.b16 %v329, %v327
      %v388 = vpack.c.b16 %v330, %v328
      %v389 = vpack.c.b16 %v333, %v331
      %v390 = vpack.c.b16 %v334, %v332
      %v391 = vpack.c.b16 %v337, %v335
      %v392 = vpack.c.b16 %v338, %v336
      %v393 = vpack.c.b16 %v341, %v339
      %v394 = vpack.c.b16 %v342, %v340
      %v395 = vpack.c.b16 %v345, %v343
      %v396 = vpack.c.b16 %v346, %v344
      %v397 = vpack.c.b16 %v349, %v347
      %v398 = vpack.c.b16 %v350, %v348
      %v399 = vpack.c.b16 %v353, %v351
      %v400 = vpack.c.b16 %v354, %v352
      %v401 = vpack.c.b16 %v357, %v355
      %v402 = vpack.c.b16 %v358, %v356
      %v403 = vpack.c.b16 %v361, %v359
      %v404 = vpack.c.b16 %v362, %v360
      %v405 = vpack.c.b16 %v365, %v363
      %v406 = vpack.c.b16 %v366, %v364
      %v407 = vpack.c.b16 %v369, %v367
      %v408 = vpack.c.b16 %v370, %v368
      %v409 = vpack.c.b16 %v373, %v371
      %v410 = vpack.c.b16 %v374, %v372
      %v411 = vpack.c.b16 %v377, %v375
      %v412 = vpack.c.b16 %v378, %v376
      %v413 = vpack.c.b16 %v381, %v379
      %v414 = vpack.c.b16 %v382, %v380
      %v450 = vunpack.c.l.b16 %v261
      %v451 = vunpack.c.l.b16 %v262
      %v452 = vunpack.c.l.b16 %v263
      %v453 = vunpack.c.l.b16 %v264
      %v454 = vunpack.c.l.b16 %v265
      %v455 = vunpack.c.l.b16 %v266
      %v456 = vunpack.c.l.b16 %v267
      %v457 = vunpack.c.l.b16 %v268
      %v458 = vunpack.c.l.b16 %v269
      %v459 = vunpack.c.l.b16 %v270
      %v460 = vunpack.c.l.b16 %v271
      %v461 = vunpack.c.l.b16 %v272
      %v462 = vunpack.c.l.b16 %v273
      %v463 = vunpack.c.l.b16 %v274
      %v464 = vunpack.c.l.b16 %v275
      %v465 = vunpack.c.l.b16 %v276
      %v466 = vunpack.c.l.b16 %v277
      %v467 = vunpack.c.l.b16 %v278
      %v468 = vunpack.c.l.b16 %v279
      %v469 = vpack.c.b16 %v451, %v450
      %v470 = vpack.c.b16 %v453, %v452
      %v471 = vpack.c.b16 %v455, %v454
      %v472 = vpack.c.b16 %v457, %v456
      %v473 = vpack.c.b16 %v459, %v458
      %v474 = vpack.c.b16 %v461, %v460
      %v475 = vpack.c.b16 %v463, %v462
      %v476 = vpack.c.b16 %v465, %v464
      %v477 = vpack.c.b16 %v467, %v466
      %v478 = vpack.c.b16 %v468, %v468
      %vm488 = vcmask 154624
      %v490 = vsel %vm488, %v384, 0
      %v493 = vsel %vm488, %v386, 0
      %v496 = vsel %vm488, %v388, 0
      %v499 = vsel %vm488, %v390, 0
      %v502 = vsel %vm488, %v392, 0
      %v505 = vsel %vm488, %v394, 0
      %v508 = vsel %vm488, %v396, 0
      %v511 = vsel %vm488, %v398, 0
      %v514 = vsel %vm488, %v400, 0
      %v517 = vsel %vm488, %v402, 0
      %v520 = vsel %vm488, %v404, 0
      %v523 = vsel %vm488, %v406, 0
      %v526 = vsel %vm488, %v408, 0
      %v529 = vsel %vm488, %v410, 0
      %v532 = vsel %vm488, %v412, 0
      %v535 = vsel %vm488, %v414, 0
      %vm537 = vcmask 1040384
      %vm538 = vcmask 1041408
      %v539 = vsel %vm537, 4294967295, 65535
      %v540 = vsel %vm538, %v539, 0
      %v542 = vand.u32 %v478, %v540
      %544 = vmatprep.subr.bf16.mxu0 0
      %545 = vmatpush1.bf16.msra.mxu0 %v469
      %546 = vmatprep.subr.bf16.mxu0 0
      %547 = vmatpush1.bf16.msra.mxu0 %v470
      %548 = vmatprep.subr.bf16.mxu0 0
      %549 = vmatpush1.bf16.msra.mxu0 %v471
      %550 = vmatprep.subr.bf16.mxu0 0
      %551 = vmatpush1.bf16.msra.mxu0 %v472
      %552 = vmatprep.subr.bf16.mxu0 0
      %553 = vmatpush1.bf16.msra.mxu0 %v473
      %554 = vmatprep.subr.bf16.mxu0 0
      %555 = vmatpush1.bf16.msra.mxu0 %v474
      %556 = vmatprep.subr.bf16.mxu0 0
      %557 = vmatpush1.bf16.msra.mxu0 %v475
      %558 = vmatprep.subr.bf16.mxu0 0
      %559 = vmatpush1.bf16.msra.mxu0 %v476
      %560 = vmatprep.subr.bf16.mxu0 0
      %561 = vmatpush1.bf16.msra.mxu0 %v477
      %562 = vmatprep.subr.bf16.mxu0 0
      %563 = vmatpush1.bf16.msra.mxu0 %v542
      %564 = vmatprep.subr.bf16.mxu0 0
      %565 = vmatpush1.bf16.msra.mxu0 0
      %566 = vmatprep.subr.bf16.mxu0 0
      %567 = vmatpush1.bf16.msra.mxu0 0
      %568 = vmatprep.subr.bf16.mxu0 0
      %569 = vmatpush1.bf16.msra.mxu0 0
      %570 = vmatprep.subr.bf16.mxu0 0
      %571 = vmatpush1.bf16.msra.mxu0 0
      %572 = vmatprep.subr.bf16.mxu0 0
      %573 = vmatpush1.bf16.msra.mxu0 0
      %574 = vmatprep.subr.bf16.mxu0 0
      %575 = vmatpush1.bf16.msra.mxu0 0
      %576 = vmatprep.mubr.bf16.mxu0 %v490
      %577 = vmatmul.mubr.bf16.gmra.mrb[0].mxu0 %v383
      %v578 = vpop.f32.mrb[0].mxu0
      %v579 = vadd.f32 %v285, %v578
      %v580 = vpop.f32.mrb[0].mxu0
      %v581 = vpop.f32.mrb[0].mxu0
      %v582 = vadd.f32 %v285, %v581
      %v583 = vpop.f32.mrb[0].mxu0
      %584 = vmatprep.mubr.bf16.mxu0 %v493
      %585 = vmatmul.mubr.bf16.gmra.mrb[0].mxu0 %v385
      %v586 = vpop.f32.mrb[0].mxu0
      %v587 = vadd.f32 %v285, %v586
      %v588 = vpop.f32.mrb[0].mxu0
      %v589 = vpop.f32.mrb[0].mxu0
      %v590 = vadd.f32 %v285, %v589
      %v591 = vpop.f32.mrb[0].mxu0
      %592 = vmatprep.mubr.bf16.mxu0 %v496
      %593 = vmatmul.mubr.bf16.gmra.mrb[0].mxu0 %v387
      %v594 = vpop.f32.mrb[0].mxu0
      %v595 = vadd.f32 %v285, %v594
      %v596 = vpop.f32.mrb[0].mxu0
      %v597 = vpop.f32.mrb[0].mxu0
      %v598 = vadd.f32 %v285, %v597
      %v599 = vpop.f32.mrb[0].mxu0
      %600 = vmatprep.mubr.bf16.mxu0 %v499
      %601 = vmatmul.mubr.bf16.gmra.mrb[0].mxu0 %v389
      %v602 = vpop.f32.mrb[0].mxu0
      %v603 = vadd.f32 %v285, %v602
      %v604 = vpop.f32.mrb[0].mxu0
      %v605 = vpop.f32.mrb[0].mxu0
      %v606 = vadd.f32 %v285, %v605
      %v607 = vpop.f32.mrb[0].mxu0
      %608 = vmatprep.mubr.bf16.mxu0 %v502
      %609 = vmatmul.mubr.bf16.gmra.mrb[0].mxu0 %v391
      %v610 = vpop.f32.mrb[0].mxu0
      %v611 = vadd.f32 %v285, %v610
      %v612 = vpop.f32.mrb[0].mxu0
      %v613 = vpop.f32.mrb[0].mxu0
      %v614 = vadd.f32 %v285, %v613
      %v615 = vpop.f32.mrb[0].mxu0
      %616 = vmatprep.mubr.bf16.mxu0 %v505
      %617 = vmatmul.mubr.bf16.gmra.mrb[0].mxu0 %v393
      %v618 = vpop.f32.mrb[0].mxu0
      %v619 = vadd.f32 %v285, %v618
      %v620 = vpop.f32.mrb[0].mxu0
      %v621 = vpop.f32.mrb[0].mxu0
      %v622 = vadd.f32 %v285, %v621
      %v623 = vpop.f32.mrb[0].mxu0
      %624 = vmatprep.mubr.bf16.mxu0 %v508
      %625 = vmatmul.mubr.bf16.gmra.mrb[0].mxu0 %v395
      %v626 = vpop.f32.mrb[0].mxu0
      %v627 = vadd.f32 %v285, %v626
      %v628 = vpop.f32.mrb[0].mxu0
      %v629 = vpop.f32.mrb[0].mxu0
      %v630 = vadd.f32 %v285, %v629
      %v631 = vpop.f32.mrb[0].mxu0
      %632 = vmatprep.mubr.bf16.mxu0 %v511
      %633 = vmatmul.mubr.bf16.gmra.mrb[0].mxu0 %v397
      %v634 = vpop.f32.mrb[0].mxu0
      %v635 = vadd.f32 %v285, %v634
      %v636 = vpop.f32.mrb[0].mxu0
      %v637 = vpop.f32.mrb[0].mxu0
      %v638 = vadd.f32 %v285, %v637
      %v639 = vpop.f32.mrb[0].mxu0
      %640 = vmatprep.mubr.bf16.mxu0 %v514
      %641 = vmatmul.mubr.bf16.gmra.mrb[0].mxu0 %v399
      %v642 = vpop.f32.mrb[0].mxu0
      %v643 = vadd.f32 %v285, %v642
      %v644 = vpop.f32.mrb[0].mxu0
      %v645 = vpop.f32.mrb[0].mxu0
      %v646 = vadd.f32 %v285, %v645
      %v647 = vpop.f32.mrb[0].mxu0
      %648 = vmatprep.mubr.bf16.mxu0 %v517
      %649 = vmatmul.mubr.bf16.gmra.mrb[0].mxu0 %v401
      %v650 = vpop.f32.mrb[0].mxu0
      %v651 = vadd.f32 %v285, %v650
      %v652 = vpop.f32.mrb[0].mxu0
      %v653 = vpop.f32.mrb[0].mxu0
      %v654 = vadd.f32 %v285, %v653
      %v655 = vpop.f32.mrb[0].mxu0
      %656 = vmatprep.mubr.bf16.mxu0 %v520
      %657 = vmatmul.mubr.bf16.gmra.mrb[0].mxu0 %v403
      %v658 = vpop.f32.mrb[0].mxu0
      %v659 = vadd.f32 %v285, %v658
      %v660 = vpop.f32.mrb[0].mxu0
      %v661 = vpop.f32.mrb[0].mxu0
      %v662 = vadd.f32 %v285, %v661
      %v663 = vpop.f32.mrb[0].mxu0
      %664 = vmatprep.mubr.bf16.mxu0 %v523
      %665 = vmatmul.mubr.bf16.gmra.mrb[0].mxu0 %v405
      %v666 = vpop.f32.mrb[0].mxu0
      %v667 = vadd.f32 %v285, %v666
      %v668 = vpop.f32.mrb[0].mxu0
      %v669 = vpop.f32.mrb[0].mxu0
      %v670 = vadd.f32 %v285, %v669
      %v671 = vpop.f32.mrb[0].mxu0
      %672 = vmatprep.mubr.bf16.mxu0 %v526
      %673 = vmatmul.mubr.bf16.gmra.mrb[0].mxu0 %v407
      %v674 = vpop.f32.mrb[0].mxu0
      %v675 = vadd.f32 %v285, %v674
      %v676 = vpop.f32.mrb[0].mxu0
      %v677 = vpop.f32.mrb[0].mxu0
      %v678 = vadd.f32 %v285, %v677
      %v679 = vpop.f32.mrb[0].mxu0
      %680 = vmatprep.mubr.bf16.mxu0 %v529
      %681 = vmatmul.mubr.bf16.gmra.mrb[0].mxu0 %v409
      %v682 = vpop.f32.mrb[0].mxu0
      %v683 = vadd.f32 %v285, %v682
      %v684 = vpop.f32.mrb[0].mxu0
      %v685 = vpop.f32.mrb[0].mxu0
      %v686 = vadd.f32 %v285, %v685
      %v687 = vpop.f32.mrb[0].mxu0
      %688 = vmatprep.mubr.bf16.mxu0 %v532
      %689 = vmatmul.mubr.bf16.gmra.mrb[0].mxu0 %v411
      %v690 = vpop.f32.mrb[0].mxu0
      %v691 = vadd.f32 %v285, %v690
      %v692 = vpop.f32.mrb[0].mxu0
      %v693 = vpop.f32.mrb[0].mxu0
      %v694 = vadd.f32 %v285, %v693
      %v695 = vpop.f32.mrb[0].mxu0
      %696 = vmatprep.mubr.bf16.mxu0 %v535
      %697 = vmatmul.mubr.bf16.gmra.mrb[0].mxu0 %v413
      %v698 = vpop.f32.mrb[0].mxu0
      %v699 = vadd.f32 %v285, %v698
      %v700 = vpop.f32.mrb[0].mxu0
      %v701 = vpop.f32.mrb[0].mxu0
      %v702 = vadd.f32 %v285, %v701
      %v703 = vpop.f32.mrb[0].mxu0
      %704 = vdwg.mxu0
      %v705 = vmax.f32 %v579, 0.0
      %v706 = vmax.f32 %v582, 0.0
      %v707 = vmax.f32 %v587, 0.0
      %v708 = vmax.f32 %v590, 0.0
      %v709 = vmax.f32 %v595, 0.0
      %v710 = vmax.f32 %v598, 0.0
      %v711 = vmax.f32 %v603, 0.0
      %v712 = vmax.f32 %v606, 0.0
      %v713 = vmax.f32 %v611, 0.0
      %v714 = vmax.f32 %v614, 0.0
      %v715 = vmax.f32 %v619, 0.0
      %v716 = vmax.f32 %v622, 0.0
      %v717 = vmax.f32 %v627, 0.0
      %v718 = vmax.f32 %v630, 0.0
      %v719 = vmax.f32 %v635, 0.0
      %v720 = vmax.f32 %v638, 0.0
      %v721 = vmax.f32 %v643, 0.0
      %v722 = vmax.f32 %v646, 0.0
      %v723 = vmax.f32 %v651, 0.0
      %v724 = vmax.f32 %v654, 0.0
      %v725 = vmax.f32 %v659, 0.0
      %v726 = vmax.f32 %v662, 0.0
      %v727 = vmax.f32 %v667, 0.0
      %v728 = vmax.f32 %v670, 0.0
      %v729 = vmax.f32 %v675, 0.0
      %v730 = vmax.f32 %v678, 0.0
      %v731 = vmax.f32 %v683, 0.0
      %v732 = vmax.f32 %v686, 0.0
      %v733 = vmax.f32 %v691, 0.0
      %v734 = vmax.f32 %v694, 0.0
      %v735 = vmax.f32 %v699, 0.0
      %v736 = vmax.f32 %v702, 0.0
      %vm737 = vcmask 523264
      %738 = vst.msk [vmem:[%s226] sm:$0xff] %vm737, %v705
      %739 = vst.msk [vmem:[%s226 + $0x8] sm:$0xff] %vm737, %v706
      %740 = vst.msk [vmem:[%s226 + $0x10] sm:$0xff] %vm737, %v707
      %741 = vst.msk [vmem:[%s226 + $0x18] sm:$0xff] %vm737, %v708
      %742 = vst.msk [vmem:[%s226 + $0x20] sm:$0xff] %vm737, %v709
      %743 = vst.msk [vmem:[%s226 + $0x28] sm:$0xff] %vm737, %v710
      %744 = vst.msk [vmem:[%s226 + $0x30] sm:$0xff] %vm737, %v711
      %745 = vst.msk [vmem:[%s226 + $0x38] sm:$0xff] %vm737, %v712
      %746 = vst.msk [vmem:[%s226 + $0x40] sm:$0xff] %vm737, %v713
      %747 = vst.msk [vmem:[%s226 + $0x48] sm:$0xff] %vm737, %v714
      %748 = vst.msk [vmem:[%s226 + $0x50] sm:$0xff] %vm737, %v715
      %749 = vst.msk [vmem:[%s226 + $0x58] sm:$0xff] %vm737, %v716
      %750 = vst.msk [vmem:[%s226 + $0x60] sm:$0xff] %vm737, %v717
      %751 = vst.msk [vmem:[%s226 + $0x68] sm:$0xff] %vm737, %v718
      %752 = vst.msk [vmem:[%s226 + $0x70] sm:$0xff] %vm737, %v719
      %753 = vst.msk [vmem:[%s226 + $0x78] sm:$0xff] %vm737, %v720
      %754 = vst.msk [vmem:[%s226 + $0x80] sm:$0xff] %vm737, %v721
      %755 = vst.msk [vmem:[%s226 + $0x88] sm:$0xff] %vm737, %v722
      %756 = vst.msk [vmem:[%s226 + $0x90] sm:$0xff] %vm737, %v723
      %757 = vst.msk [vmem:[%s226 + $0x98] sm:$0xff] %vm737, %v724
      %758 = vst.msk [vmem:[%s226 + $0xa0] sm:$0xff] %vm737, %v725
      %759 = vst.msk [vmem:[%s226 + $0xa8] sm:$0xff] %vm737, %v726
      %760 = vst.msk [vmem:[%s226 + $0xb0] sm:$0xff] %vm737, %v727
      %761 = vst.msk [vmem:[%s226 + $0xb8] sm:$0xff] %vm737, %v728
      %762 = vst.msk [vmem:[%s226 + $0xc0] sm:$0xff] %vm737, %v729
      %763 = vst.msk [vmem:[%s226 + $0xc8] sm:$0xff] %vm737, %v730
      %764 = vst.msk [vmem:[%s226 + $0xd0] sm:$0xff] %vm737, %v731
      %765 = vst.msk [vmem:[%s226 + $0xd8] sm:$0xff] %vm737, %v732
      %766 = vst.msk [vmem:[%s226 + $0xe0] sm:$0xff] %vm737, %v733
      %767 = vst.msk [vmem:[%s226 + $0xe8] sm:$0xff] %vm737, %v734
      %768 = vst.msk [vmem:[%s226 + $0xf0] sm:$0xff] %vm737, %v735
      %769 = vst.msk [vmem:[%s226 + $0xf8] sm:$0xff] %vm737, %v736
      %s770 = smul.u32 32, %s18
      %p771 = scmp.lt.s32.totalorder %s770, 63
      %s772 = scalar_select %p771, %s770, 63
      %p773 = scmp.lt.s32.totalorder %s19, 0
      %s774 = scalar_select %p773, %s19, 0
      %s775 = sadd.s32 %s774, %s772
      %s776 = smul.addr %s775, 8
      %s777 = scalar_lea.vmem %s3, %s776
      // Predicated region
      $region33: #{stem_forward.2} parent=31 // pred_check
        %p778 = pneg %p124
      $region34: #{stem_forward.2} parent=31 // pred_check_branch
        %780 = sbr.rel (%p778) target = $region36
      $region35: #{stem_forward.2} parent=31 // pred_region
        %s781 = smul.u32 32, %s18
      $region36: #{stem_forward.2} parent=31 // pred_fallthru
        _
    $region32: #{stem_forward.2} parent=5 // pred_fallthru
      _
    %p782 = scmp.le.s32.totalorder 2, %s9
    // Predicated region
    $region37: #{stem_forward.2} parent=5 // pred_check
      %p783 = pneg %p782
    $region38: #{stem_forward.2} parent=5 // pred_check_branch
      %785 = sbr.rel (%p783) target = $region40
    $region39: #{stem_forward.2} parent=5 // pred_region
      %s786 = ssub.s32 %s9, 2
      // Predicated region
      $region41: #{stem_forward.2} parent=39 // pred_check
        %p787 = pneg %p130
      $region42: #{stem_forward.2} parent=39 // pred_check_branch
        %789 = sbr.rel (%p787) target = $region44
      $region43: #{stem_forward.2} parent=39 // pred_region
        %s790 = smul.u32 32, %s20
        %p791 = scmp.lt.s32.totalorder %s790, 63
        %s792 = scalar_select %p791, %s790, 63
        %p793 = scmp.lt.s32.totalorder %s21, 0
        %s794 = scalar_select %p793, %s21, 0
        %s795 = sadd.s32 %s794, %s792
        %s796 = smul.addr %s795, 8
        %s797 = scalar_lea.vmem %s3, %s796
      $region44: #{stem_forward.2} parent=39 // pred_fallthru
        _
    $region40: #{stem_forward.2} parent=5 // pred_fallthru
      _
  $region6: #{stem_forward.2} parent=0 // loop_footer
    %s13 = sadd.s32 1, %s9
  $region7: #{stem_forward.2} parent=0 // loop_footer_branch
    %8 = sbr.rel target = $region3
  $region8: #{stem_forward.2} parent=0 // loop_exit
    _

// kernel: stem_forward.3
$region0: #{stem_forward.3}
  #allocation0 [shape = 'u32[]', space=smem, size = 0x4, offset = 0x4, fixed_abs, tag = 'smem constant byte address 0x4 - core index']
  #allocation1 [shape = 'u32[144,128]{1,0:T(1,128)}', space=vmem, size = 0x12000, scoped, tag = 'internal scratch']
  %s0 = inlined_call_operand.vmem [shape: f32[9,128,64], index: 0, kind: input, shape index: {}]
  %s1 = inlined_call_operand.hbm [shape: f32[128,64], index: 1, kind: output, shape index: {}]
  %s2 = sld [smem:[#allocation0]]
  $region14: #{stem_forward.3} parent=0
    _
  %s4 = ssub.s32 1, %s2
  %s5 = scalar_select 0, %s4, %s2
  $region1: #{stem_forward.3} parent=0
    #allocation2 [shape = 'u8[65536]{0}', space=vmem, size = 0x10000, scoped, tag = 'output window, operand 0, single buffered']
    #allocation3 [shape = 's32[1]{0}', space=sflag, size = 0x4, scoped, tag = 'scoped memory for stem_forward.3']
    %6 = vsyncpa [#allocation3], 0
    // Predicated region
    $region2: #{stem_forward.3} parent=1 // pred_check
      _
    $region3: #{stem_forward.3} parent=1 // pred_check_branch
      %8 = sbr.rel (0) target = $region5
    $region4: #{stem_forward.3} parent=1 // pred_region
      _
    $region5: #{stem_forward.3} parent=1 // pred_fallthru
      _
    %v9 = vld [vmem:[%s0] sm:$0xff]
    %v10 = vld [vmem:[%s0 + $0x8] sm:$0xff]
    %v11 = vld [vmem:[%s0 + $0x10] sm:$0xff]
    %v12 = vld [vmem:[%s0 + $0x18] sm:$0xff]
    %v13 = vld [vmem:[%s0 + $0x20] sm:$0xff]
    %v14 = vld [vmem:[%s0 + $0x28] sm:$0xff]
    %v15 = vld [vmem:[%s0 + $0x30] sm:$0xff]
    %v16 = vld [vmem:[%s0 + $0x38] sm:$0xff]
    %v17 = vld [vmem:[%s0 + $0x40] sm:$0xff]
    %v18 = vld [vmem:[%s0 + $0x48] sm:$0xff]
    %v19 = vld [vmem:[%s0 + $0x50] sm:$0xff]
    %v20 = vld [vmem:[%s0 + $0x58] sm:$0xff]
    %v21 = vld [vmem:[%s0 + $0x60] sm:$0xff]
    %v22 = vld [vmem:[%s0 + $0x68] sm:$0xff]
    %v23 = vld [vmem:[%s0 + $0x70] sm:$0xff]
    %v24 = vld [vmem:[%s0 + $0x78] sm:$0xff]
    %s25 = scalar_lea.vmem %s0, 128
    %v26 = vld [vmem:[%s25] sm:$0xff]
    %v27 = vld [vmem:[%s25 + $0x8] sm:$0xff]
    %v28 = vld [vmem:[%s25 + $0x10] sm:$0xff]
    %v29 = vld [vmem:[%s25 + $0x18] sm:$0xff]
    %v30 = vld [vmem:[%s25 + $0x20] sm:$0xff]
    %v31 = vld [vmem:[%s25 + $0x28] sm:$0xff]
    %v32 = vld [vmem:[%s25 + $0x30] sm:$0xff]
    %v33 = vld [vmem:[%s25 + $0x38] sm:$0xff]
    %v34 = vld [vmem:[%s25 + $0x40] sm:$0xff]
    %v35 = vld [vmem:[%s25 + $0x48] sm:$0xff]
    %v36 = vld [vmem:[%s25 + $0x50] sm:$0xff]
    %v37 = vld [vmem:[%s25 + $0x58] sm:$0xff]
    %v38 = vld [vmem:[%s25 + $0x60] sm:$0xff]
    %v39 = vld [vmem:[%s25 + $0x68] sm:$0xff]
    %v40 = vld [vmem:[%s25 + $0x70] sm:$0xff]
    %v41 = vld [vmem:[%s25 + $0x78] sm:$0xff]
    %v42 = vmax.f32 %v9, %v26
    %v43 = vmax.f32 %v10, %v27
    %v44 = vmax.f32 %v11, %v28
    %v45 = vmax.f32 %v12, %v29
    %v46 = vmax.f32 %v13, %v30
    %v47 = vmax.f32 %v14, %v31
    %v48 = vmax.f32 %v15, %v32
    %v49 = vmax.f32 %v16, %v33
    %v50 = vmax.f32 %v17, %v34
    %v51 = vmax.f32 %v18, %v35
    %v52 = vmax.f32 %v19, %v36
    %v53 = vmax.f32 %v20, %v37
    %v54 = vmax.f32 %v21, %v38
    %v55 = vmax.f32 %v22, %v39
    %v56 = vmax.f32 %v23, %v40
    %v57 = vmax.f32 %v24, %v41
    %s58 = scalar_lea.vmem %s0, 256
    %v59 = vld [vmem:[%s58] sm:$0xff]
    %v60 = vld [vmem:[%s58 + $0x8] sm:$0xff]
    %v61 = vld [vmem:[%s58 + $0x10] sm:$0xff]
    %v62 = vld [vmem:[%s58 + $0x18] sm:$0xff]
    %v63 = vld [vmem:[%s58 + $0x20] sm:$0xff]
    %v64 = vld [vmem:[%s58 + $0x28] sm:$0xff]
    %v65 = vld [vmem:[%s58 + $0x30] sm:$0xff]
    %v66 = vld [vmem:[%s58 + $0x38] sm:$0xff]
    %v67 = vld [vmem:[%s58 + $0x40] sm:$0xff]
    %v68 = vld [vmem:[%s58 + $0x48] sm:$0xff]
    %v69 = vld [vmem:[%s58 + $0x50] sm:$0xff]
    %v70 = vld [vmem:[%s58 + $0x58] sm:$0xff]
    %v71 = vld [vmem:[%s58 + $0x60] sm:$0xff]
    %v72 = vld [vmem:[%s58 + $0x68] sm:$0xff]
    %v73 = vld [vmem:[%s58 + $0x70] sm:$0xff]
    %v74 = vld [vmem:[%s58 + $0x78] sm:$0xff]
    %v75 = vmax.f32 %v42, %v59
    %v76 = vmax.f32 %v43, %v60
    %v77 = vmax.f32 %v44, %v61
    %v78 = vmax.f32 %v45, %v62
    %v79 = vmax.f32 %v46, %v63
    %v80 = vmax.f32 %v47, %v64
    %v81 = vmax.f32 %v48, %v65
    %v82 = vmax.f32 %v49, %v66
    %v83 = vmax.f32 %v50, %v67
    %v84 = vmax.f32 %v51, %v68
    %v85 = vmax.f32 %v52, %v69
    %v86 = vmax.f32 %v53, %v70
    %v87 = vmax.f32 %v54, %v71
    %v88 = vmax.f32 %v55, %v72
    %v89 = vmax.f32 %v56, %v73
    %v90 = vmax.f32 %v57, %v74
    %s91 = scalar_lea.vmem %s0, 384
    %v92 = vld [vmem:[%s91] sm:$0xff]
    %v93 = vld [vmem:[%s91 + $0x8] sm:$0xff]
    %v94 = vld [vmem:[%s91 + $0x10] sm:$0xff]
    %v95 = vld [vmem:[%s91 + $0x18] sm:$0xff]
    %v96 = vld [vmem:[%s91 + $0x20] sm:$0xff]
    %v97 = vld [vmem:[%s91 + $0x28] sm:$0xff]
    %v98 = vld [vmem:[%s91 + $0x30] sm:$0xff]
    %v99 = vld [vmem:[%s91 + $0x38] sm:$0xff]
    %v100 = vld [vmem:[%s91 + $0x40] sm:$0xff]
    %v101 = vld [vmem:[%s91 + $0x48] sm:$0xff]
    %v102 = vld [vmem:[%s91 + $0x50] sm:$0xff]
    %v103 = vld [vmem:[%s91 + $0x58] sm:$0xff]
    %v104 = vld [vmem:[%s91 + $0x60] sm:$0xff]
    %v105 = vld [vmem:[%s91 + $0x68] sm:$0xff]
    %v106 = vld [vmem:[%s91 + $0x70] sm:$0xff]
    %v107 = vld [vmem:[%s91 + $0x78] sm:$0xff]
    %v108 = vmax.f32 %v75, %v92
    %v109 = vmax.f32 %v76, %v93
    %v110 = vmax.f32 %v77, %v94
    %v111 = vmax.f32 %v78, %v95
    %v112 = vmax.f32 %v79, %v96
    %v113 = vmax.f32 %v80, %v97
    %v114 = vmax.f32 %v81, %v98
    %v115 = vmax.f32 %v82, %v99
    %v116 = vmax.f32 %v83, %v100
    %v117 = vmax.f32 %v84, %v101
    %v118 = vmax.f32 %v85, %v102
    %v119 = vmax.f32 %v86, %v103
    %v120 = vmax.f32 %v87, %v104
    %v121 = vmax.f32 %v88, %v105
    %v122 = vmax.f32 %v89, %v106
    %v123 = vmax.f32 %v90, %v107
    %s124 = scalar_lea.vmem %s0, 512
    %v125 = vld [vmem:[%s124] sm:$0xff]
    %v126 = vld [vmem:[%s124 + $0x8] sm:$0xff]
    %v127 = vld [vmem:[%s124 + $0x10] sm:$0xff]
    %v128 = vld [vmem:[%s124 + $0x18] sm:$0xff]
    %v129 = vld [vmem:[%s124 + $0x20] sm:$0xff]
    %v130 = vld [vmem:[%s124 + $0x28] sm:$0xff]
    %v131 = vld [vmem:[%s124 + $0x30] sm:$0xff]
    %v132 = vld [vmem:[%s124 + $0x38] sm:$0xff]
    %v133 = vld [vmem:[%s124 + $0x40] sm:$0xff]
    %v134 = vld [vmem:[%s124 + $0x48] sm:$0xff]
    %v135 = vld [vmem:[%s124 + $0x50] sm:$0xff]
    %v136 = vld [vmem:[%s124 + $0x58] sm:$0xff]
    %v137 = vld [vmem:[%s124 + $0x60] sm:$0xff]
    %v138 = vld [vmem:[%s124 + $0x68] sm:$0xff]
    %v139 = vld [vmem:[%s124 + $0x70] sm:$0xff]
    %v140 = vld [vmem:[%s124 + $0x78] sm:$0xff]
    %v141 = vmax.f32 %v108, %v125
    %v142 = vmax.f32 %v109, %v126
    %v143 = vmax.f32 %v110, %v127
    %v144 = vmax.f32 %v111, %v128
    %v145 = vmax.f32 %v112, %v129
    %v146 = vmax.f32 %v113, %v130
    %v147 = vmax.f32 %v114, %v131
    %v148 = vmax.f32 %v115, %v132
    %v149 = vmax.f32 %v116, %v133
    %v150 = vmax.f32 %v117, %v134
    %v151 = vmax.f32 %v118, %v135
    %v152 = vmax.f32 %v119, %v136
    %v153 = vmax.f32 %v120, %v137
    %v154 = vmax.f32 %v121, %v138
    %v155 = vmax.f32 %v122, %v139
    %v156 = vmax.f32 %v123, %v140
    %s157 = scalar_lea.vmem %s0, 640
    %v158 = vld [vmem:[%s157] sm:$0xff]
    %v159 = vld [vmem:[%s157 + $0x8] sm:$0xff]
    %v160 = vld [vmem:[%s157 + $0x10] sm:$0xff]
    %v161 = vld [vmem:[%s157 + $0x18] sm:$0xff]
    %v162 = vld [vmem:[%s157 + $0x20] sm:$0xff]
    %v163 = vld [vmem:[%s157 + $0x28] sm:$0xff]
    %v164 = vld [vmem:[%s157 + $0x30] sm:$0xff]
    %v165 = vld [vmem:[%s157 + $0x38] sm:$0xff]
    %v166 = vld [vmem:[%s157 + $0x40] sm:$0xff]
    %v167 = vld [vmem:[%s157 + $0x48] sm:$0xff]
    %v168 = vld [vmem:[%s157 + $0x50] sm:$0xff]
    %v169 = vld [vmem:[%s157 + $0x58] sm:$0xff]
    %v170 = vld [vmem:[%s157 + $0x60] sm:$0xff]
    %v171 = vld [vmem:[%s157 + $0x68] sm:$0xff]
    %v172 = vld [vmem:[%s157 + $0x70] sm:$0xff]
    %v173 = vld [vmem:[%s157 + $0x78] sm:$0xff]
    %v174 = vmax.f32 %v141, %v158
    %v175 = vmax.f32 %v142, %v159
    %v176 = vmax.f32 %v143, %v160
    %v177 = vmax.f32 %v144, %v161
    %v178 = vmax.f32 %v145, %v162
    %v179 = vmax.f32 %v146, %v163
    %v180 = vmax.f32 %v147, %v164
    %v181 = vmax.f32 %v148, %v165
    %v182 = vmax.f32 %v149, %v166
    %v183 = vmax.f32 %v150, %v167
    %v184 = vmax.f32 %v151, %v168
    %v185 = vmax.f32 %v152, %v169
    %v186 = vmax.f32 %v153, %v170
    %v187 = vmax.f32 %v154, %v171
    %v188 = vmax.f32 %v155, %v172
    %v189 = vmax.f32 %v156, %v173
    %s190 = scalar_lea.vmem %s0, 768
    %v191 = vld [vmem:[%s190] sm:$0xff]
    %v192 = vld [vmem:[%s190 + $0x8] sm:$0xff]
    %v193 = vld [vmem:[%s190 + $0x10] sm:$0xff]
    %v194 = vld [vmem:[%s190 + $0x18] sm:$0xff]
    %v195 = vld [vmem:[%s190 + $0x20] sm:$0xff]
    %v196 = vld [vmem:[%s190 + $0x28] sm:$0xff]
    %v197 = vld [vmem:[%s190 + $0x30] sm:$0xff]
    %v198 = vld [vmem:[%s190 + $0x38] sm:$0xff]
    %v199 = vld [vmem:[%s190 + $0x40] sm:$0xff]
    %v200 = vld [vmem:[%s190 + $0x48] sm:$0xff]
    %v201 = vld [vmem:[%s190 + $0x50] sm:$0xff]
    %v202 = vld [vmem:[%s190 + $0x58] sm:$0xff]
    %v203 = vld [vmem:[%s190 + $0x60] sm:$0xff]
    %v204 = vld [vmem:[%s190 + $0x68] sm:$0xff]
    %v205 = vld [vmem:[%s190 + $0x70] sm:$0xff]
    %v206 = vld [vmem:[%s190 + $0x78] sm:$0xff]
    %v207 = vmax.f32 %v174, %v191
    %v208 = vmax.f32 %v175, %v192
    %v209 = vmax.f32 %v176, %v193
    %v210 = vmax.f32 %v177, %v194
    %v211 = vmax.f32 %v178, %v195
    %v212 = vmax.f32 %v179, %v196
    %v213 = vmax.f32 %v180, %v197
    %v214 = vmax.f32 %v181, %v198
    %v215 = vmax.f32 %v182, %v199
    %v216 = vmax.f32 %v183, %v200
    %v217 = vmax.f32 %v184, %v201
    %v218 = vmax.f32 %v185, %v202
    %v219 = vmax.f32 %v186, %v203
    %v220 = vmax.f32 %v187, %v204
    %v221 = vmax.f32 %v188, %v205
    %v222 = vmax.f32 %v189, %v206
    %s223 = scalar_lea.vmem %s0, 896
    %v224 = vld [vmem:[%s223] sm:$0xff]
    %v225 = vld [vmem:[%s223 + $0x8] sm:$0xff]
    %v226 = vld [vmem:[%s223 + $0x10] sm:$0xff]
    %v227 = vld [vmem:[%s223 + $0x18] sm:$0xff]
    %v228 = vld [vmem:[%s223 + $0x20] sm:$0xff]
    %v229 = vld [vmem:[%s223 + $0x28] sm:$0xff]
    %v230 = vld [vmem:[%s223 + $0x30] sm:$0xff]
    %v231 = vld [vmem:[%s223 + $0x38] sm:$0xff]
    %v232 = vld [vmem:[%s223 + $0x40] sm:$0xff]
    %v233 = vld [vmem:[%s223 + $0x48] sm:$0xff]
    %v234 = vld [vmem:[%s223 + $0x50] sm:$0xff]
    %v235 = vld [vmem:[%s223 + $0x58] sm:$0xff]
    %v236 = vld [vmem:[%s223 + $0x60] sm:$0xff]
    %v237 = vld [vmem:[%s223 + $0x68] sm:$0xff]
    %v238 = vld [vmem:[%s223 + $0x70] sm:$0xff]
    %v239 = vld [vmem:[%s223 + $0x78] sm:$0xff]
    %v240 = vmax.f32 %v207, %v224
    %v241 = vmax.f32 %v208, %v225
    %v242 = vmax.f32 %v209, %v226
    %v243 = vmax.f32 %v210, %v227
    %v244 = vmax.f32 %v211, %v228
    %v245 = vmax.f32 %v212, %v229
    %v246 = vmax.f32 %v213, %v230
    %v247 = vmax.f32 %v214, %v231
    %v248 = vmax.f32 %v215, %v232
    %v249 = vmax.f32 %v216, %v233
    %v250 = vmax.f32 %v217, %v234
    %v251 = vmax.f32 %v218, %v235
    %v252 = vmax.f32 %v219, %v236
    %v253 = vmax.f32 %v220, %v237
    %v254 = vmax.f32 %v221, %v238
    %v255 = vmax.f32 %v222, %v239
    %s256 = scalar_lea.vmem %s0, 1024
    %v257 = vld [vmem:[%s256] sm:$0xff]
    %v258 = vld [vmem:[%s256 + $0x8] sm:$0xff]
    %v259 = vld [vmem:[%s256 + $0x10] sm:$0xff]
    %v260 = vld [vmem:[%s256 + $0x18] sm:$0xff]
    %v261 = vld [vmem:[%s256 + $0x20] sm:$0xff]
    %v262 = vld [vmem:[%s256 + $0x28] sm:$0xff]
    %v263 = vld [vmem:[%s256 + $0x30] sm:$0xff]
    %v264 = vld [vmem:[%s256 + $0x38] sm:$0xff]
    %v265 = vld [vmem:[%s256 + $0x40] sm:$0xff]
    %v266 = vld [vmem:[%s256 + $0x48] sm:$0xff]
    %v267 = vld [vmem:[%s256 + $0x50] sm:$0xff]
    %v268 = vld [vmem:[%s256 + $0x58] sm:$0xff]
    %v269 = vld [vmem:[%s256 + $0x60] sm:$0xff]
    %v270 = vld [vmem:[%s256 + $0x68] sm:$0xff]
    %v271 = vld [vmem:[%s256 + $0x70] sm:$0xff]
    %v272 = vld [vmem:[%s256 + $0x78] sm:$0xff]
    %v273 = vmax.f32 %v240, %v257
    %v274 = vmax.f32 %v241, %v258
    %v275 = vmax.f32 %v242, %v259
    %v276 = vmax.f32 %v243, %v260
    %v277 = vmax.f32 %v244, %v261
    %v278 = vmax.f32 %v245, %v262
    %v279 = vmax.f32 %v246, %v263
    %v280 = vmax.f32 %v247, %v264
    %v281 = vmax.f32 %v248, %v265
    %v282 = vmax.f32 %v249, %v266
    %v283 = vmax.f32 %v250, %v267
    %v284 = vmax.f32 %v251, %v268
    %v285 = vmax.f32 %v252, %v269
    %v286 = vmax.f32 %v253, %v270
    %v287 = vmax.f32 %v254, %v271
    %v288 = vmax.f32 %v255, %v272
    %vm289 = vcmask 523264
    %290 = vst.msk [vmem:[#allocation2] sm:$0xff] %vm289, %v273
    %291 = vst.msk [vmem:[#allocation2 + $0x8] sm:$0xff] %vm289, %v274
    %292 = vst.msk [vmem:[#allocation2 + $0x10] sm:$0xff] %vm289, %v275
    %293 = vst.msk [vmem:[#allocation2 + $0x18] sm:$0xff] %vm289, %v276
    %294 = vst.msk [vmem:[#allocation2 + $0x20] sm:$0xff] %vm289, %v277
    %295 = vst.msk [vmem:[#allocation2 + $0x28] sm:$0xff] %vm289, %v278
    %296 = vst.msk [vmem:[#allocation2 + $0x30] sm:$0xff] %vm289, %v279
    %297 = vst.msk [vmem:[#allocation2 + $0x38] sm:$0xff] %vm289, %v280
    %298 = vst.msk [vmem:[#allocation2 + $0x40] sm:$0xff] %vm289, %v281
    %299 = vst.msk [vmem:[#allocation2 + $0x48] sm:$0xff] %vm289, %v282
    %300 = vst.msk [vmem:[#allocation2 + $0x50] sm:$0xff] %vm289, %v283
    %301 = vst.msk [vmem:[#allocation2 + $0x58] sm:$0xff] %vm289, %v284
    %302 = vst.msk [vmem:[#allocation2 + $0x60] sm:$0xff] %vm289, %v285
    %303 = vst.msk [vmem:[#allocation2 + $0x68] sm:$0xff] %vm289, %v286
    %304 = vst.msk [vmem:[#allocation2 + $0x70] sm:$0xff] %vm289, %v287
    %305 = vst.msk [vmem:[#allocation2 + $0x78] sm:$0xff] %vm289, %v288
    // Predicated region
    $region6: #{stem_forward.3} parent=1 // pred_check
      _
    $region7: #{stem_forward.3} parent=1 // pred_check_branch
      %307 = sbr.rel (0) target = $region9
    $region8: #{stem_forward.3} parent=1 // pred_region
      %s309 = ssub.s32 2048, 2048
      %310 = vsyncadd [#allocation3], %s309
      %s311 = sshll.u32 [#allocation2], 4
      %s312 = int_to_ptr.vmem [resolvable:$true] %s311
      %317 = dma.vmem_to_hbm [thread:$0]  %s312, 2048, %s1, [#allocation3], 128, 128, 8
    $region9: #{stem_forward.3} parent=1 // pred_fallthru
      _
    // Predicated region
    $region10: #{stem_forward.3} parent=1 // pred_check
      _
    $region11: #{stem_forward.3} parent=1 // pred_check_branch
      %319 = sbr.rel (0) target = $region13
    $region12: #{stem_forward.3} parent=1 // pred_region
      %320 = dma.done [#allocation3], 2048
    $region13: #{stem_forward.3} parent=1 // pred_fallthru
      _
    %321 = vsyncpa [#allocation3], 1

</llo_original>
